<compile_context>
chip_gen: v7x
topology: tpu7x:2x2x1
jax: 0.10.0
libtpu: 0.0.40
codegen_flags: <defaults>
</compile_context>

<pallas_src>
import functools

import jax
import jax.numpy as jnp
from jax import lax
from jax.experimental import pallas as pl
from jax.experimental.pallas import tpu as pltpu

_LANE = 128
_GROUP = 8            # accumulator sublane height; (8, 128) f32 == one vreg


def _round_up(x, m):
    return (x + m - 1) // m * m


def _sublane_granularity(*dtypes):
    """Row granularity so every block matches the native tile of its dtype."""
    g = _GROUP
    for dt in dtypes:
        size = jnp.dtype(dt).itemsize
        if size < 4:
            g = max(g, (4 // size) * 8)    # bf16/f16 -> 16, int8/bool -> 32
    return g


def _dice_partial_kernel(pred_ref, target_ref, a_out, b_out, c_out,
                         a_acc, b_acc, c_acc, *,
                         br, rows_total, blocks_per_split, naive_dice,
                         mask_possible):
    """Partial dice sums for one (sample, split) pair.

    Grid: (sample i [parallel], split g [parallel], row-block k [arbitrary]).
    Each step streams a (br, 128) tile of pred/target, folds it over sublane
    groups with pure VPU adds and accumulates into three (8,128) f32 VMEM
    accumulators:
        a += sigmoid(pred) * target
        b += sigmoid(pred)^2      (or sigmoid(pred) if naive_dice)
        c += target^2             (or target        if naive_dice)
    The finalize branch does the single cross-lane reduction and writes the
    three scalars (broadcast over an (8,128) output block) for the wrapper.
    """
    g = pl.program_id(1)
    k = pl.program_id(2)

    @pl.when(k == 0)
    def _init():
        a_acc[...] = jnp.zeros_like(a_acc)
        b_acc[...] = jnp.zeros_like(b_acc)
        c_acc[...] = jnp.zeros_like(c_acc)

    p = jax.nn.sigmoid(pred_ref[0].astype(jnp.float32))   # (br, 128)
    t = target_ref[0].astype(jnp.float32)                  # target.float()

    groups = br // _GROUP

    def _accumulate(pv, tv):
        def red(x):            # (br,128) -> (8,128); sublane-group adds (VPU only)
            return x.reshape(groups, _GROUP, _LANE).sum(axis=0)
        a_acc[...] += red(pv * tv)
        if naive_dice:
            b_acc[...] += red(pv)
            c_acc[...] += red(tv)
        else:
            b_acc[...] += red(pv * pv)
            c_acc[...] += red(tv * tv)

    if mask_possible:
        block_id = g * blocks_per_split + k
        valid = rows_total - block_id * br   # rows of this logical block in range

        @pl.when(valid >= br)
        def _full():
            _accumulate(p, t)

        @pl.when(valid < br)
        def _tail():                          # ragged tail block / empty block
            rows = lax.broadcasted_iota(jnp.int32, (br, _LANE), 0)
            m = rows < valid
            _accumulate(jnp.where(m, p, 0.0), jnp.where(m, t, 0.0))
    else:
        _accumulate(p, t)

    @pl.when(k == blocks_per_split - 1)
    def _finalize():
        a_out[...] = jnp.full(a_out.shape, jnp.sum(a_acc[...]), jnp.float32)
        b_out[...] = jnp.full(b_out.shape, jnp.sum(b_acc[...]), jnp.float32)
        c_out[...] = jnp.full(c_out.shape, jnp.sum(c_acc[...]), jnp.float32)


def dice_loss_pallas(pred, target, *, weight=None, eps=1e-3, loss_weight=1.0,
                     reduction="mean", naive_dice=False, avg_factor=None,
                     block_rows=4096, n_split=None):
    """DiceLoss.forward (use_sigmoid=True, activate=True)."""
    n = pred.shape[0]
    pred2 = pred.reshape(n, -1)            # pred.flatten(1)
    target2 = target.reshape(n, -1)        # target.flatten(1)
    L = pred2.shape[1]

    # Keep native (low-precision) dtypes; the f32 upcast happens in-kernel.
    if target2.dtype == jnp.bool_:
        target2 = target2.astype(jnp.int8)

    # Lane/sublane-dense per-sample layout (R, 128).  Row granularity is the
    # native sublane tile of the narrowest dtype so no sub-tile blocks appear;
    # the common c*h*w case needs no padding (and hence no extra HBM copy).
    gran = _sublane_granularity(pred2.dtype, target2.dtype)
    Lp = _round_up(max(L, 1), gran * _LANE)
    if Lp != L:
        pad = Lp - L
        # sigmoid(-1e30) == 0 (underflows to -inf for f16; sigmoid still 0), so
        # padded elements contribute nothing to a, b or c (target padding is 0).
        pred2 = jnp.pad(pred2, ((0, 0), (0, pad)), constant_values=-1e30)
        target2 = jnp.pad(target2, ((0, 0), (0, pad)))
    R = Lp // _LANE                                   # rows per sample

    # Row-block size: multiple of `gran`, <= R, and small enough that the
    # double-buffered inputs + full-block f32 temporaries fit well in VMEM.
    in_bytes = pred2.dtype.itemsize + target2.dtype.itemsize
    bytes_per_row = _LANE * (2 * in_bytes + 6 * 4)
    max_rows = max(((28 << 20) // bytes_per_row) // gran * gran, gran)
    br = min(_round_up(int(block_rows), gran), R, max_rows)
    kb = pl.cdiv(R, br)                               # row blocks per sample

    # Split the reduction in two when the batch alone can't feed both v7x
    # TensorCores (n odd / n == 1).  Harmless on single-TC v5e / v6e.
    if n_split is None:
        n_split = 2 if (n % 2 == 1 and kb >= 2) else 1
    G = max(1, min(int(n_split), kb))
    kg = pl.cdiv(kb, G)                               # row blocks per split
    mask_possible = (G * kg != kb) or (R % br != 0)

    pred3 = pred2.reshape(n, R, _LANE)
    target3 = target2.reshape(n, R, _LANE)

    def in_map(i, g, k):                              # clamp keeps the DMA in-bounds
        return (i, jnp.minimum(g * kg + k, kb - 1), 0)

    out_map = lambda i, g, k: (i, g, 0, 0)
    part_shape = jax.ShapeDtypeStruct((n, G, _GROUP, _LANE), jnp.float32)

    vmem_need = (2 * br * _LANE * in_bytes            # double-buffered inputs
                 + 6 * br * _LANE * 4                 # f32 temporaries (p, t, products)
                 + 3 * _GROUP * _LANE * 4             # accumulators
                 + 6 * _GROUP * _LANE * 4             # outputs (double-buffered)
                 + (1 << 20))                         # slack
    vmem_limit = int(min(max(vmem_need, 8 << 20), 32 << 20))   # <=32MiB: v7x-safe

    kernel = functools.partial(
        _dice_partial_kernel, br=br, rows_total=R, blocks_per_split=kg,
        naive_dice=bool(naive_dice), mask_possible=mask_possible)

    out_a, out_b, out_c = pl.pallas_call(
        kernel,
        out_shape=(part_shape, part_shape, part_shape),
        grid=(n, G, kg),
        in_specs=[
            pl.BlockSpec((1, br, _LANE), in_map),
            pl.BlockSpec((1, br, _LANE), in_map),
        ],
        out_specs=(
            pl.BlockSpec((1, 1, _GROUP, _LANE), out_map),
            pl.BlockSpec((1, 1, _GROUP, _LANE), out_map),
            pl.BlockSpec((1, 1, _GROUP, _LANE), out_map),
        ),
        scratch_shapes=[
            pltpu.VMEM((_GROUP, _LANE), jnp.float32),
            pltpu.VMEM((_GROUP, _LANE), jnp.float32),
            pltpu.VMEM((_GROUP, _LANE), jnp.float32),
        ],
        compiler_params=pltpu.CompilerParams(
            dimension_semantics=("parallel", "parallel", "arbitrary"),
            vmem_limit_bytes=vmem_limit),
    )(pred3, target3)

    # Combine per-split partial sums and finish the dice math (n*G scalars).
    a = out_a[:, :, 0, 0].sum(axis=1)
    b = out_b[:, :, 0, 0].sum(axis=1)
    c = out_c[:, :, 0, 0].sum(axis=1)

    eps = float(eps)
    if naive_dice:
        d = (2.0 * a + eps) / (b + c + eps)
    else:
        d = 2.0 * a / ((b + eps) + (c + eps))
    per_sample = 1.0 - d

    # weight_reduce_loss glue (tiny, over n samples only).
    if weight is not None:
        per_sample = per_sample * weight
    if avg_factor is None:
        if reduction == "mean":
            loss = jnp.mean(per_sample)
        elif reduction == "sum":
            loss = jnp.sum(per_sample)
        else:  # 'none'
            loss = per_sample
    else:
        if reduction != "mean":
            raise ValueError('avg_factor can not be used with reduction="sum"')
        loss = jnp.sum(per_sample) / (avg_factor + jnp.finfo(jnp.float32).eps)
    return loss_weight * loss


def _reference(pred, target, eps=1e-3, loss_weight=1.0):
    """Plain-JAX replica of the PyTorch module (defaults) for verification."""
    n = pred.shape[0]
    p = jax.nn.sigmoid(pred.reshape(n, -1).astype(jnp.float32))
    t = target.reshape(n, -1).astype(jnp.float32)
    a = jnp.sum(p * t, axis=1)
    b = jnp.sum(p * p, axis=1) + eps
    c = jnp.sum(t * t, axis=1) + eps
    d = 2.0 * a / (b + c)
    return loss_weight * jnp.mean(1.0 - d)


if __name__ == "__main__":
    key = jax.random.PRNGKey(0)
    k1, k2, k3, k4, k5, k6 = jax.random.split(key, 6)

    # Case 1: lane/sublane-aligned f32 inputs, even batch -> no padding path.
    n, c, h, w = 2, 4, 16, 16
    pred_a = jax.random.normal(k1, (n, c, h, w), dtype=jnp.float32)
    target_a = (jax.random.uniform(k2, (n, c, h, w)) > 0.5).astype(jnp.float32)
    loss_a = jax.block_until_ready(dice_loss_pallas(pred_a, target_a))
    ref_a = _reference(pred_a, target_a)
    assert jnp.allclose(loss_a, ref_a, atol=1e-5, rtol=1e-5), (loss_a, ref_a)

    # Case 2: native low-precision inputs (bf16 logits, boolean mask).
    pred_b = jax.random.normal(k3, (n, c, h, w), dtype=jnp.float32).astype(jnp.bfloat16)
    target_b = jax.random.uniform(k4, (n, c, h, w)) > 0.5
    loss_b = jax.block_until_ready(dice_loss_pallas(pred_b, target_b))
    ref_b = _reference(pred_b, target_b)
    assert jnp.allclose(loss_b, ref_b, atol=1e-5, rtol=1e-5), (loss_b, ref_b)

    # Case 3: odd batch + ragged feature length -> two-way split (feeds both
    # v7x TensorCores) and in-kernel tail masking.
    n2, c2, h2, w2 = 1, 3, 40, 40
    pred_c = jax.random.normal(k5, (n2, c2, h2, w2), dtype=jnp.float32)
    target_c = (jax.random.uniform(k6, (n2, c2, h2, w2)) > 0.5).astype(jnp.float32)
    loss_c = jax.block_until_ready(dice_loss_pallas(pred_c, target_c, block_rows=16))
    ref_c = _reference(pred_c, target_c)
    assert jnp.allclose(loss_c, ref_c, atol=1e-5, rtol=1e-5), (loss_c, ref_c)

    print("KERNEL_OK")
</pallas_src>

<mosaic_0001>
module attributes {stable_mosaic.version = 11 : i64} {
  func.func @_dice_partial_kernel(%arg0: i32, %arg1: i32, %arg2: i32, %arg3: memref<1x8x128xf32, #tpu.memory_space<vmem>>, %arg4: memref<1x8x128xf32, #tpu.memory_space<vmem>>, %arg5: memref<1x1x8x128xf32, #tpu.memory_space<vmem>>, %arg6: memref<1x1x8x128xf32, #tpu.memory_space<vmem>>, %arg7: memref<1x1x8x128xf32, #tpu.memory_space<vmem>>, %arg8: memref<8x128xf32, #tpu.memory_space<vmem>>, %arg9: memref<8x128xf32, #tpu.memory_space<vmem>>, %arg10: memref<8x128xf32, #tpu.memory_space<vmem>>) attributes {dimension_semantics = [#tpu.dimension_semantics<parallel>, #tpu.dimension_semantics<parallel>, #tpu.dimension_semantics<arbitrary>], iteration_bounds = array<i64: 2, 1, 1>, scalar_prefetch = 0 : i64, scratch_operands = 3 : i64, tpu.core_type = #tpu.core_type<tc>, window_params = [{transform_indices = @transform_0, window_bounds = array<i64: 1, 8, 128>}, {transform_indices = @transform_1, window_bounds = array<i64: 1, 8, 128>}, {transform_indices = @transform_2, window_bounds = array<i64: 1, 1, 8, 128>}, {transform_indices = @transform_3, window_bounds = array<i64: 1, 1, 8, 128>}, {transform_indices = @transform_4, window_bounds = array<i64: 1, 1, 8, 128>}]} {
    %c0_i32 = arith.constant 0 : i32
    %0 = arith.cmpi eq, %arg2, %c0_i32 : i32
    %1 = arith.extui %0 : i1 to i32
    %c0_i32_0 = arith.constant 0 : i32
    %2 = arith.cmpi ne, %1, %c0_i32_0 : i32
    scf.if %2 {
      %cst_23 = arith.constant 0.000000e+00 : f32
      %33 = vector.broadcast %cst_23 : f32 to vector<8x128xf32>
      %c0_24 = arith.constant 0 : index
      %c0_25 = arith.constant 0 : index
      %34 = vector.load %arg8[%c0_24, %c0_25] : memref<8x128xf32, #tpu.memory_space<vmem>>, vector<8x128xf32>
      tpu.vector_store %arg8[%c0_24, %c0_25], %33 {strides = array<i32>} : memref<8x128xf32, #tpu.memory_space<vmem>>, vector<8x128xf32>,
      %cst_26 = arith.constant 0.000000e+00 : f32
      %35 = vector.broadcast %cst_26 : f32 to vector<8x128xf32>
      %c0_27 = arith.constant 0 : index
      %c0_28 = arith.constant 0 : index
      %36 = vector.load %arg9[%c0_27, %c0_28] : memref<8x128xf32, #tpu.memory_space<vmem>>, vector<8x128xf32>
      tpu.vector_store %arg9[%c0_27, %c0_28], %35 {strides = array<i32>} : memref<8x128xf32, #tpu.memory_space<vmem>>, vector<8x128xf32>,
      %cst_29 = arith.constant 0.000000e+00 : f32
      %37 = vector.broadcast %cst_29 : f32 to vector<8x128xf32>
      %c0_30 = arith.constant 0 : index
      %c0_31 = arith.constant 0 : index
      %38 = vector.load %arg10[%c0_30, %c0_31] : memref<8x128xf32, #tpu.memory_space<vmem>>, vector<8x128xf32>
      tpu.vector_store %arg10[%c0_30, %c0_31], %37 {strides = array<i32>} : memref<8x128xf32, #tpu.memory_space<vmem>>, vector<8x128xf32>,
    } else {
    }
    %c0 = arith.constant 0 : index
    %c0_1 = arith.constant 0 : index
    %c0_2 = arith.constant 0 : index
    %3 = vector.load %arg3[%c0, %c0_1, %c0_2] : memref<1x8x128xf32, #tpu.memory_space<vmem>>, vector<1x8x128xf32>
    %4 = vector.shape_cast %3 : vector<1x8x128xf32> to vector<8x128xf32>
    %5 = arith.negf %4 : vector<8x128xf32>
    %6 = math.exp %5 : vector<8x128xf32>
    %cst = arith.constant 1.000000e+00 : f32
    %7 = vector.broadcast %cst : f32 to vector<8x128xf32>
    %8 = arith.addf %7, %6 : vector<8x128xf32>
    %9 = arith.divf %7, %8 : vector<8x128xf32>
    %c0_3 = arith.constant 0 : index
    %c0_4 = arith.constant 0 : index
    %c0_5 = arith.constant 0 : index
    %10 = vector.load %arg4[%c0_3, %c0_4, %c0_5] : memref<1x8x128xf32, #tpu.memory_space<vmem>>, vector<1x8x128xf32>
    %11 = vector.shape_cast %10 : vector<1x8x128xf32> to vector<8x128xf32>
    %c0_6 = arith.constant 0 : index
    %c0_7 = arith.constant 0 : index
    %12 = vector.load %arg8[%c0_6, %c0_7] : memref<8x128xf32, #tpu.memory_space<vmem>>, vector<8x128xf32>
    %13 = arith.mulf %9, %11 : vector<8x128xf32>
    %14 = vector.shape_cast %13 : vector<8x128xf32> to vector<1x8x128xf32>
    %cst_8 = arith.constant dense<0.000000e+00> : vector<8x128xf32>
    %15 = vector.multi_reduction <add>, %14, %cst_8 [0] : vector<1x8x128xf32> to vector<8x128xf32>
    %16 = arith.addf %12, %15 : vector<8x128xf32>
    %c0_9 = arith.constant 0 : index
    %c0_10 = arith.constant 0 : index
    %17 = vector.load %arg8[%c0_9, %c0_10] : memref<8x128xf32, #tpu.memory_space<vmem>>, vector<8x128xf32>
    tpu.vector_store %arg8[%c0_9, %c0_10], %16 {strides = array<i32>} : memref<8x128xf32, #tpu.memory_space<vmem>>, vector<8x128xf32>,
    %c0_11 = arith.constant 0 : index
    %c0_12 = arith.constant 0 : index
    %18 = vector.load %arg9[%c0_11, %c0_12] : memref<8x128xf32, #tpu.memory_space<vmem>>, vector<8x128xf32>
    %19 = arith.mulf %9, %9 : vector<8x128xf32>
    %20 = vector.shape_cast %19 : vector<8x128xf32> to vector<1x8x128xf32>
    %cst_13 = arith.constant dense<0.000000e+00> : vector<8x128xf32>
    %21 = vector.multi_reduction <add>, %20, %cst_13 [0] : vector<1x8x128xf32> to vector<8x128xf32>
    %22 = arith.addf %18, %21 : vector<8x128xf32>
    %c0_14 = arith.constant 0 : index
    %c0_15 = arith.constant 0 : index
    %23 = vector.load %arg9[%c0_14, %c0_15] : memref<8x128xf32, #tpu.memory_space<vmem>>, vector<8x128xf32>
    tpu.vector_store %arg9[%c0_14, %c0_15], %22 {strides = array<i32>} : memref<8x128xf32, #tpu.memory_space<vmem>>, vector<8x128xf32>,
    %c0_16 = arith.constant 0 : index
    %c0_17 = arith.constant 0 : index
    %24 = vector.load %arg10[%c0_16, %c0_17] : memref<8x128xf32, #tpu.memory_space<vmem>>, vector<8x128xf32>
    %25 = arith.mulf %11, %11 : vector<8x128xf32>
    %26 = vector.shape_cast %25 : vector<8x128xf32> to vector<1x8x128xf32>
    %cst_18 = arith.constant dense<0.000000e+00> : vector<8x128xf32>
    %27 = vector.multi_reduction <add>, %26, %cst_18 [0] : vector<1x8x128xf32> to vector<8x128xf32>
    %28 = arith.addf %24, %27 : vector<8x128xf32>
    %c0_19 = arith.constant 0 : index
    %c0_20 = arith.constant 0 : index
    %29 = vector.load %arg10[%c0_19, %c0_20] : memref<8x128xf32, #tpu.memory_space<vmem>>, vector<8x128xf32>
    tpu.vector_store %arg10[%c0_19, %c0_20], %28 {strides = array<i32>} : memref<8x128xf32, #tpu.memory_space<vmem>>, vector<8x128xf32>,
    %c0_i32_21 = arith.constant 0 : i32
    %30 = arith.cmpi eq, %arg2, %c0_i32_21 : i32
    %31 = arith.extui %30 : i1 to i32
    %c0_i32_22 = arith.constant 0 : i32
    %32 = arith.cmpi ne, %31, %c0_i32_22 : i32
    scf.if %32 {
      %c0_23 = arith.constant 0 : index
      %c0_24 = arith.constant 0 : index
      %33 = vector.load %arg8[%c0_23, %c0_24] : memref<8x128xf32, #tpu.memory_space<vmem>>, vector<8x128xf32>
      %34 = vector.shape_cast %33 : vector<8x128xf32> to vector<1x8x128xf32>
      %cst_25 = arith.constant dense<0.000000e+00> : vector<1xf32>
      %35 = vector.multi_reduction <add>, %34, %cst_25 [1, 2] : vector<1x8x128xf32> to vector<1xf32>
      %36 = vector.shape_cast %35 : vector<1xf32> to vector<1x1x1xf32>
      %37 = vector.extract %36[0, 0, 0] : f32 from vector<1x1x1xf32>
      %38 = vector.broadcast %37 : f32 to vector<1x1x8x128xf32>
      %c0_26 = arith.constant 0 : index
      %c0_27 = arith.constant 0 : index
      %c0_28 = arith.constant 0 : index
      %c0_29 = arith.constant 0 : index
      %39 = vector.load %arg5[%c0_26, %c0_27, %c0_28, %c0_29] : memref<1x1x8x128xf32, #tpu.memory_space<vmem>>, vector<1x1x8x128xf32>
      tpu.vector_store %arg5[%c0_26, %c0_27, %c0_28, %c0_29], %38 {strides = array<i32>} : memref<1x1x8x128xf32, #tpu.memory_space<vmem>>, vector<1x1x8x128xf32>,
      %c0_30 = arith.constant 0 : index
      %c0_31 = arith.constant 0 : index
      %40 = vector.load %arg9[%c0_30, %c0_31] : memref<8x128xf32, #tpu.memory_space<vmem>>, vector<8x128xf32>
      %41 = vector.shape_cast %40 : vector<8x128xf32> to vector<1x8x128xf32>
      %cst_32 = arith.constant dense<0.000000e+00> : vector<1xf32>
      %42 = vector.multi_reduction <add>, %41, %cst_32 [1, 2] : vector<1x8x128xf32> to vector<1xf32>
      %43 = vector.shape_cast %42 : vector<1xf32> to vector<1x1x1xf32>
      %44 = vector.extract %43[0, 0, 0] : f32 from vector<1x1x1xf32>
      %45 = vector.broadcast %44 : f32 to vector<1x1x8x128xf32>
      %c0_33 = arith.constant 0 : index
      %c0_34 = arith.constant 0 : index
      %c0_35 = arith.constant 0 : index
      %c0_36 = arith.constant 0 : index
      %46 = vector.load %arg6[%c0_33, %c0_34, %c0_35, %c0_36] : memref<1x1x8x128xf32, #tpu.memory_space<vmem>>, vector<1x1x8x128xf32>
      tpu.vector_store %arg6[%c0_33, %c0_34, %c0_35, %c0_36], %45 {strides = array<i32>} : memref<1x1x8x128xf32, #tpu.memory_space<vmem>>, vector<1x1x8x128xf32>,
      %c0_37 = arith.constant 0 : index
      %c0_38 = arith.constant 0 : index
      %47 = vector.load %arg10[%c0_37, %c0_38] : memref<8x128xf32, #tpu.memory_space<vmem>>, vector<8x128xf32>
      %48 = vector.shape_cast %47 : vector<8x128xf32> to vector<1x8x128xf32>
      %cst_39 = arith.constant dense<0.000000e+00> : vector<1xf32>
      %49 = vector.multi_reduction <add>, %48, %cst_39 [1, 2] : vector<1x8x128xf32> to vector<1xf32>
      %50 = vector.shape_cast %49 : vector<1xf32> to vector<1x1x1xf32>
      %51 = vector.extract %50[0, 0, 0] : f32 from vector<1x1x1xf32>
      %52 = vector.broadcast %51 : f32 to vector<1x1x8x128xf32>
      %c0_40 = arith.constant 0 : index
      %c0_41 = arith.constant 0 : index
      %c0_42 = arith.constant 0 : index
      %c0_43 = arith.constant 0 : index
      %53 = vector.load %arg7[%c0_40, %c0_41, %c0_42, %c0_43] : memref<1x1x8x128xf32, #tpu.memory_space<vmem>>, vector<1x1x8x128xf32>
      tpu.vector_store %arg7[%c0_40, %c0_41, %c0_42, %c0_43], %52 {strides = array<i32>} : memref<1x1x8x128xf32, #tpu.memory_space<vmem>>, vector<1x1x8x128xf32>,
    } else {
    }
    return
  }
  func.func @transform_0(%arg0: i32, %arg1: i32, %arg2: i32) -> (i32, i32, i32) {
    %c1_i32 = arith.constant 1 : i32
    %0 = arith.muli %arg1, %c1_i32 : i32
    %1 = arith.addi %0, %arg2 : i32
    %c0_i32 = arith.constant 0 : i32
    %2 = arith.minsi %1, %c0_i32 : i32
    %c0_i32_0 = arith.constant 0 : i32
    %c0_i32_1 = arith.constant 0 : i32
    return %arg0, %2, %c0_i32_0 : i32, i32, i32
  }
  func.func @transform_1(%arg0: i32, %arg1: i32, %arg2: i32) -> (i32, i32, i32) {
    %c1_i32 = arith.constant 1 : i32
    %0 = arith.muli %arg1, %c1_i32 : i32
    %1 = arith.addi %0, %arg2 : i32
    %c0_i32 = arith.constant 0 : i32
    %2 = arith.minsi %1, %c0_i32 : i32
    %c0_i32_0 = arith.constant 0 : i32
    %c0_i32_1 = arith.constant 0 : i32
    return %arg0, %2, %c0_i32_0 : i32, i32, i32
  }
  func.func @transform_2(%arg0: i32, %arg1: i32, %arg2: i32) -> (i32, i32, i32, i32) {
    %c0_i32 = arith.constant 0 : i32
    %c0_i32_0 = arith.constant 0 : i32
    %c0_i32_1 = arith.constant 0 : i32
    return %arg0, %arg1, %c0_i32, %c0_i32_0 : i32, i32, i32, i32
  }
  func.func @transform_3(%arg0: i32, %arg1: i32, %arg2: i32) -> (i32, i32, i32, i32) {
    %c0_i32 = arith.constant 0 : i32
    %c0_i32_0 = arith.constant 0 : i32
    %c0_i32_1 = arith.constant 0 : i32
    return %arg0, %arg1, %c0_i32, %c0_i32_0 : i32, i32, i32, i32
  }
  func.func @transform_4(%arg0: i32, %arg1: i32, %arg2: i32) -> (i32, i32, i32, i32) {
    %c0_i32 = arith.constant 0 : i32
    %c0_i32_0 = arith.constant 0 : i32
    %c0_i32_1 = arith.constant 0 : i32
    return %arg0, %arg1, %c0_i32, %c0_i32_0 : i32, i32, i32, i32
  }
}

</mosaic_0001>

<llo_original>
// kernel: tpu_custom_call.1
$region0: #{tpu_custom_call.1}
  #allocation0 [shape = 'u32[]', space=smem, size = 0x4, offset = 0x4, fixed_abs, tag = 'smem constant byte address 0x4 - core index']
  #allocation1 [shape = 'u32[144,128]{1,0:T(1,128)}', space=vmem, size = 0x12000, scoped, tag = 'internal scratch']
  #allocation2 [shape = 'f32[8,128]{1,0:T(8,128)}', space=vmem, size = 0x1000, scoped, tag = 'scratch operand']
  #allocation3 [shape = 'f32[8,128]{1,0:T(8,128)}', space=vmem, size = 0x1000, scoped, tag = 'scratch operand']
  #allocation4 [shape = 'f32[8,128]{1,0:T(8,128)}', space=vmem, size = 0x1000, scoped, tag = 'scratch operand']
  %s0 = inlined_call_operand.hbm [shape: f32[2,8,128], index: 0, kind: input, shape index: {}]
  %s1 = inlined_call_operand.hbm [shape: f32[2,8,128], index: 1, kind: input, shape index: {}]
  %s2 = inlined_call_operand.hbm [shape: f32[2,1,8,128], index: 2, kind: output, shape index: {0}]
  %s3 = inlined_call_operand.hbm [shape: f32[2,1,8,128], index: 3, kind: output, shape index: {1}]
  %s4 = inlined_call_operand.hbm [shape: f32[2,1,8,128], index: 4, kind: output, shape index: {2}]
  %5 = xla_tuple %s2, %s3, %s4
  %s6 = sld [smem:[#allocation0]]
  $region73: #{tpu_custom_call.1} parent=0
    _
  %s8 = ssub.s32 1, %s6
  %s9 = scalar_select 0, %s8, %s6
  $region1: #{tpu_custom_call.1} parent=0
    #allocation5 [shape = 'u8[8192]{0}', space=vmem, size = 0x2000, scoped, tag = 'input window, operand 0']
    #allocation6 [shape = 's32[2]{0}', space=sflag, size = 0x8, scoped, tag = 'scoped memory for tpu_custom_call.1']
    #allocation7 [shape = 's32[2]{0}', space=sflag, size = 0x8, scoped, tag = 'scoped memory for tpu_custom_call.1']
    #allocation8 [shape = 'u8[8192]{0}', space=vmem, size = 0x2000, scoped, tag = 'input window, operand 1']
    #allocation9 [shape = 's32[2]{0}', space=sflag, size = 0x8, scoped, tag = 'scoped memory for tpu_custom_call.1']
    #allocation10 [shape = 'u8[8192]{0}', space=vmem, size = 0x2000, scoped, tag = 'output window, operand 0']
    #allocation11 [shape = 'u8[8192]{0}', space=vmem, size = 0x2000, scoped, tag = 'output window, operand 1']
    #allocation12 [shape = 's32[2]{0}', space=sflag, size = 0x8, scoped, tag = 'scoped memory for tpu_custom_call.1']
    #allocation13 [shape = 'u8[8192]{0}', space=vmem, size = 0x2000, scoped, tag = 'output window, operand 2']
    %10 = vsyncpa [#allocation6], 0
    %s11 = scalar_lea.sflag [#allocation6], 1
    %12 = vsyncpa %s11, 0
    %13 = vsyncpa [#allocation9], 0
    %s14 = scalar_lea.sflag [#allocation9], 1
    %15 = vsyncpa %s14, 0
    %16 = vsyncpa [#allocation7], 0
    %s17 = scalar_lea.sflag [#allocation7], 1
    %18 = vsyncpa %s17, 0
    %19 = vsyncpa [#allocation12], 0
    %s20 = scalar_lea.sflag [#allocation12], 1
    %21 = vsyncpa %s20, 0
    loop: start=0, step=1, limit=4
    $region2: #{tpu_custom_call.1} parent=1 // loop_pre_header
      _
    $region3: #{tpu_custom_call.1} parent=1 // loop_header
      %s23 = sphi 0, %s27
      %p24 = scmp.ge.s32.totalorder %s23, 4
      %s30 = sphi 0, %s49
      %s31 = sphi 0, %s45
      %s32 = sphi 0, %s41
      %s33 = sphi 0, %s30
      %s34 = sphi 0, %s31
      %s35 = sphi 0, %s32
      %s36 = sphi 0, %s33
      %s37 = sphi 0, %s34
      %s38 = sphi 0, %s35
      %s60 = sphi 0, %s62
      %s63 = sphi 0, %s60
      %s64 = sphi 0, %s63
      %s80 = sphi 0, %s64
      %s94 = sphi 0, %s96
      %s97 = sphi 0, %s94
      %s98 = sphi 0, %s97
      %s114 = sphi 0, %s98
      %s122 = sphi 0, %s124
      %s125 = sphi 0, %s122
      %s126 = sphi 0, %s125
      %s142 = sphi 0, %s126
      %s150 = sphi 0, %s152
      %s153 = sphi 0, %s150
      %s154 = sphi 0, %s153
      %s170 = sphi 0, %s154
      %s178 = sphi 0, %s180
      %s181 = sphi 0, %s178
      %s182 = sphi 0, %s181
      %s198 = sphi 0, %s182
    $region4: #{tpu_custom_call.1} parent=1 // loop_header_branch
      %26 = sbr.rel (%p24) target = $region8
    $region5: #{tpu_custom_call.1} parent=1 // loop_body
      %s28 = ssub.s32 %s23, 1
      %s29 = ssub.s32 %s23, 2
      %s39 = sadd.s32 1, %s32
      %p40 = scmp.ge.s32.totalorder %s39, 1
      %s41 = scalar_select %p40, 0, %s39
      %s42 = sadd.s32 1, %s31
      %s43 = scalar_select %p40, %s42, %s31
      %p44 = scmp.ge.s32.totalorder %s43, 1
      %s45 = scalar_select %p44, 0, %s43
      %s46 = sadd.s32 1, %s30
      %s47 = scalar_select %p44, %s46, %s30
      %p48 = scmp.ge.s32.totalorder %s47, 2
      %s49 = scalar_select %p48, 0, %s47
      %s50 = sadd.s32 %s31, %s32
      %p51 = scmp.lt.s32.totalorder %s50, 0
      %s52 = scalar_select %p51, %s50, 0
      %s53 = sadd.s32 %s45, %s41
      %p54 = scmp.lt.s32.totalorder %s53, 0
      %s55 = scalar_select %p54, %s53, 0
      %s56 = ssub.s32 %s30, %s49
      %s57 = ssub.s32 %s52, %s55
      %s58 = sor.u32 %s56, %s57
      %p59 = scmp.eq.s32.totalorder %s58, 0
      %s61 = sadd.s32 %s60, 1
      %s62 = scalar_select %p59, %s60, %s61
      %p65 = pneg %p59
      %p66 = scmp.eq.s32.totalorder %s23, 1
      %p67 = por %p65, %p66
      %p68 = scmp.ne.s32.totalorder %s60, %s63
      %p69 = scmp.eq.s32.totalorder %s23, 0
      %p70 = por %p68, %p69
      %p71 = scmp.ne.s32.totalorder %s60, %s63
      %p72 = scmp.eq.s32.totalorder %s28, 1
      %p73 = por %p71, %p72
      %p74 = scmp.ne.s32.totalorder %s63, %s64
      %p75 = scmp.eq.s32.totalorder %s28, 0
      %p76 = por %p74, %p75
      %p77 = scmp.ne.s32.totalorder %s63, %s64
      %p78 = scmp.eq.s32.totalorder %s29, 1
      %p79 = por %p77, %p78
      %p81 = scmp.ne.s32.totalorder %s64, %s80
      %p82 = scmp.eq.s32.totalorder %s29, 0
      %p83 = por %p81, %p82
      %s84 = sadd.s32 %s31, %s32
      %p85 = scmp.lt.s32.totalorder %s84, 0
      %s86 = scalar_select %p85, %s84, 0
      %s87 = sadd.s32 %s45, %s41
      %p88 = scmp.lt.s32.totalorder %s87, 0
      %s89 = scalar_select %p88, %s87, 0
      %s90 = ssub.s32 %s30, %s49
      %s91 = ssub.s32 %s86, %s89
      %s92 = sor.u32 %s90, %s91
      %p93 = scmp.eq.s32.totalorder %s92, 0
      %s95 = sadd.s32 %s94, 1
      %s96 = scalar_select %p93, %s94, %s95
      %p99 = pneg %p93
      %p100 = scmp.eq.s32.totalorder %s23, 1
      %p101 = por %p99, %p100
      %p102 = scmp.ne.s32.totalorder %s94, %s97
      %p103 = scmp.eq.s32.totalorder %s23, 0
      %p104 = por %p102, %p103
      %p105 = scmp.ne.s32.totalorder %s94, %s97
      %p106 = scmp.eq.s32.totalorder %s28, 1
      %p107 = por %p105, %p106
      %p108 = scmp.ne.s32.totalorder %s97, %s98
      %p109 = scmp.eq.s32.totalorder %s28, 0
      %p110 = por %p108, %p109
      %p111 = scmp.ne.s32.totalorder %s97, %s98
      %p112 = scmp.eq.s32.totalorder %s29, 1
      %p113 = por %p111, %p112
      %p115 = scmp.ne.s32.totalorder %s98, %s114
      %p116 = scmp.eq.s32.totalorder %s29, 0
      %p117 = por %p115, %p116
      %s118 = ssub.s32 %s30, %s49
      %s119 = ssub.s32 %s31, %s45
      %s120 = sor.u32 %s118, %s119
      %p121 = scmp.eq.s32.totalorder %s120, 0
      %s123 = sadd.s32 %s122, 1
      %s124 = scalar_select %p121, %s122, %s123
      %p127 = pneg %p121
      %p128 = scmp.eq.s32.totalorder %s23, 1
      %p129 = por %p127, %p128
      %p130 = scmp.ne.s32.totalorder %s122, %s125
      %p131 = scmp.eq.s32.totalorder %s23, 0
      %p132 = por %p130, %p131
      %p133 = scmp.ne.s32.totalorder %s122, %s125
      %p134 = scmp.eq.s32.totalorder %s28, 1
      %p135 = por %p133, %p134
      %p136 = scmp.ne.s32.totalorder %s125, %s126
      %p137 = scmp.eq.s32.totalorder %s28, 0
      %p138 = por %p136, %p137
      %p139 = scmp.ne.s32.totalorder %s125, %s126
      %p140 = scmp.eq.s32.totalorder %s29, 1
      %p141 = por %p139, %p140
      %p143 = scmp.ne.s32.totalorder %s126, %s142
      %p144 = scmp.eq.s32.totalorder %s29, 0
      %p145 = por %p143, %p144
      %s146 = ssub.s32 %s30, %s49
      %s147 = ssub.s32 %s31, %s45
      %s148 = sor.u32 %s146, %s147
      %p149 = scmp.eq.s32.totalorder %s148, 0
      %s151 = sadd.s32 %s150, 1
      %s152 = scalar_select %p149, %s150, %s151
      %p155 = pneg %p149
      %p156 = scmp.eq.s32.totalorder %s23, 1
      %p157 = por %p155, %p156
      %p158 = scmp.ne.s32.totalorder %s150, %s153
      %p159 = scmp.eq.s32.totalorder %s23, 0
      %p160 = por %p158, %p159
      %p161 = scmp.ne.s32.totalorder %s150, %s153
      %p162 = scmp.eq.s32.totalorder %s28, 1
      %p163 = por %p161, %p162
      %p164 = scmp.ne.s32.totalorder %s153, %s154
      %p165 = scmp.eq.s32.totalorder %s28, 0
      %p166 = por %p164, %p165
      %p167 = scmp.ne.s32.totalorder %s153, %s154
      %p168 = scmp.eq.s32.totalorder %s29, 1
      %p169 = por %p167, %p168
      %p171 = scmp.ne.s32.totalorder %s154, %s170
      %p172 = scmp.eq.s32.totalorder %s29, 0
      %p173 = por %p171, %p172
      %s174 = ssub.s32 %s30, %s49
      %s175 = ssub.s32 %s31, %s45
      %s176 = sor.u32 %s174, %s175
      %p177 = scmp.eq.s32.totalorder %s176, 0
      %s179 = sadd.s32 %s178, 1
      %s180 = scalar_select %p177, %s178, %s179
      %p183 = pneg %p177
      %p184 = scmp.eq.s32.totalorder %s23, 1
      %p185 = por %p183, %p184
      %p186 = scmp.ne.s32.totalorder %s178, %s181
      %p187 = scmp.eq.s32.totalorder %s23, 0
      %p188 = por %p186, %p187
      %p189 = scmp.ne.s32.totalorder %s178, %s181
      %p190 = scmp.eq.s32.totalorder %s28, 1
      %p191 = por %p189, %p190
      %p192 = scmp.ne.s32.totalorder %s181, %s182
      %p193 = scmp.eq.s32.totalorder %s28, 0
      %p194 = por %p192, %p193
      %p195 = scmp.ne.s32.totalorder %s181, %s182
      %p196 = scmp.eq.s32.totalorder %s29, 1
      %p197 = por %p195, %p196
      %p199 = scmp.ne.s32.totalorder %s182, %s198
      %p200 = scmp.eq.s32.totalorder %s29, 0
      %p201 = por %p199, %p200
      %p202 = scmp.le.s32.totalorder 1, %s23
      %p203 = scmp.lt.s32.totalorder %s23, 3
      %p204 = pnand %p202, %p203
      %p205 = pneg %p204
      // Predicated region
      $region9: #{tpu_custom_call.1} parent=5 // pred_check
        _
      $region10: #{tpu_custom_call.1} parent=5 // pred_check_branch
        %207 = sbr.rel (%p204) target = $region12
      $region11: #{tpu_custom_call.1} parent=5 // pred_region
        %s208 = ssub.s32 %s23, 1
      $region12: #{tpu_custom_call.1} parent=5 // pred_fallthru
        _
      %p209 = scmp.lt.s32.totalorder %s23, 2
      // Predicated region
      $region13: #{tpu_custom_call.1} parent=5 // pred_check
        %p210 = pneg %p209
      $region14: #{tpu_custom_call.1} parent=5 // pred_check_branch
        %212 = sbr.rel (%p210) target = $region16
      $region15: #{tpu_custom_call.1} parent=5 // pred_region
        // Predicated region
        $region17: #{tpu_custom_call.1} parent=15 // pred_check
          %p213 = pneg %p70
        $region18: #{tpu_custom_call.1} parent=15 // pred_check_branch
          %215 = sbr.rel (%p213) target = $region20
        $region19: #{tpu_custom_call.1} parent=15 // pred_region
          %s216 = sand.u32 %s60, 1
          %s217 = scalar_lea.sflag [#allocation6], %s216
          %s218 = sand.u32 %s60, 1
          %s219 = smul.addr %s218, 8
          %s220 = scalar_lea.vmem [#allocation5], %s219
          %s221 = sadd.s32 %s31, %s32
          %p222 = scmp.lt.s32.totalorder %s221, 0
          %s223 = scalar_select %p222, %s221, 0
          %s225 = ssub.s32 128, 128
          %226 = vsyncadd %s217, %s225
          %s227 = sadd.s32 %s223, %s30
          %s228 = smul.addr %s227, 128
          %s229 = scalar_lea.hbm %s0, %s228
          %s231 = sshll.u32 %s220, 4
          %s232 = int_to_ptr.vmem [resolvable:$true] %s231
          %234 = dma.hbm_to_vmem [thread:$0]  %s229, 128, %s232, %s217
        $region20: #{tpu_custom_call.1} parent=15 // pred_fallthru
          _
        // Predicated region
        $region21: #{tpu_custom_call.1} parent=15 // pred_check
          %p235 = pneg %p104
        $region22: #{tpu_custom_call.1} parent=15 // pred_check_branch
          %237 = sbr.rel (%p235) target = $region24
        $region23: #{tpu_custom_call.1} parent=15 // pred_region
          %s238 = sand.u32 %s94, 1
          %s239 = scalar_lea.sflag [#allocation9], %s238
          %s240 = sand.u32 %s94, 1
          %s241 = smul.addr %s240, 8
          %s242 = scalar_lea.vmem [#allocation8], %s241
          %s243 = sadd.s32 %s31, %s32
          %p244 = scmp.lt.s32.totalorder %s243, 0
          %s245 = scalar_select %p244, %s243, 0
          %s247 = ssub.s32 128, 128
          %248 = vsyncadd %s239, %s247
          %s249 = sadd.s32 %s245, %s30
          %s250 = smul.addr %s249, 128
          %s251 = scalar_lea.hbm %s1, %s250
          %s253 = sshll.u32 %s242, 4
          %s254 = int_to_ptr.vmem [resolvable:$true] %s253
          %256 = dma.hbm_to_vmem [thread:$0]  %s251, 128, %s254, %s239
        $region24: #{tpu_custom_call.1} parent=15 // pred_fallthru
          _
      $region16: #{tpu_custom_call.1} parent=5 // pred_fallthru
        _
      %p257 = scmp.le.s32.totalorder 1, %s23
      %p258 = scmp.lt.s32.totalorder %s23, 3
      %p259 = pnand %p257, %p258
      %p260 = pneg %p259
      // Predicated region
      $region25: #{tpu_custom_call.1} parent=5 // pred_check
        _
      $region26: #{tpu_custom_call.1} parent=5 // pred_check_branch
        %262 = sbr.rel (%p259) target = $region28
      $region27: #{tpu_custom_call.1} parent=5 // pred_region
        %s263 = ssub.s32 %s23, 1
        %s264 = sand.u32 %s63, 1
        %s265 = scalar_lea.sflag [#allocation6], %s264
        %s266 = sand.u32 %s63, 1
        %s267 = smul.addr %s266, 8
        %s268 = scalar_lea.vmem [#allocation5], %s267
        // Predicated region
        $region29: #{tpu_custom_call.1} parent=27 // pred_check
          %p269 = pneg %p76
        $region30: #{tpu_custom_call.1} parent=27 // pred_check_branch
          %271 = sbr.rel (%p269) target = $region32
        $region31: #{tpu_custom_call.1} parent=27 // pred_region
          %272 = dma.done %s265, 128
        $region32: #{tpu_custom_call.1} parent=27 // pred_fallthru
          _
        %s273 = sand.u32 %s97, 1
        %s274 = scalar_lea.sflag [#allocation9], %s273
        %s275 = sand.u32 %s97, 1
        %s276 = smul.addr %s275, 8
        %s277 = scalar_lea.vmem [#allocation8], %s276
        // Predicated region
        $region33: #{tpu_custom_call.1} parent=27 // pred_check
          %p278 = pneg %p110
        $region34: #{tpu_custom_call.1} parent=27 // pred_check_branch
          %280 = sbr.rel (%p278) target = $region36
        $region35: #{tpu_custom_call.1} parent=27 // pred_region
          %281 = dma.done %s274, 128
        $region36: #{tpu_custom_call.1} parent=27 // pred_fallthru
          _
        %s282 = sand.u32 %s63, 1
        %s283 = scalar_lea.sflag [#allocation6], %s282
        %s284 = sand.u32 %s63, 1
        %s285 = smul.addr %s284, 8
        %s286 = scalar_lea.vmem [#allocation5], %s285
        %p287 = pneg %p76
        %p288 = pneg %p73
        %s289 = sand.u32 %s97, 1
        %s290 = scalar_lea.sflag [#allocation9], %s289
        %s291 = sand.u32 %s97, 1
        %s292 = smul.addr %s291, 8
        %s293 = scalar_lea.vmem [#allocation8], %s292
        %p294 = pneg %p110
        %p295 = pneg %p107
        %p296 = pneg %p138
        %p297 = pneg %p135
        %s298 = sand.u32 %s125, 1
        %s299 = scalar_lea.sflag [#allocation7], %s298
        %s300 = sand.u32 %s125, 1
        %s301 = smul.addr %s300, 8
        %s302 = scalar_lea.vmem [#allocation10], %s301
        %p303 = pneg %p166
        %p304 = pneg %p163
        %s305 = sand.u32 %s28, 1
        %s306 = scalar_lea.sflag [#allocation12], %s305
        %s307 = sand.u32 %s153, 1
        %s308 = smul.addr %s307, 8
        %s309 = scalar_lea.vmem [#allocation11], %s308
        %p310 = pneg %p194
        %p311 = pneg %p191
        %s312 = sand.u32 %s28, 1
        %s313 = scalar_lea.sflag [#allocation12], %s312
        %s314 = sand.u32 %s181, 1
        %s315 = smul.addr %s314, 8
        %s316 = scalar_lea.vmem [#allocation13], %s315
        %s317 = sadd.s32 %s34, %s35
        %p318 = scmp.lt.s32.totalorder %s317, 0
        %s319 = scalar_select %p318, %s317, 0
        %s320 = sadd.s32 %s34, %s35
        %p321 = scmp.lt.s32.totalorder %s320, 0
        %s322 = scalar_select %p321, %s320, 0
        %p323 = scmp.eq.s32.totalorder %s35, 0
        // Predicated region
        $region37: #{tpu_custom_call.1} parent=27 // pred_check
          %p324 = pneg %p323
        $region38: #{tpu_custom_call.1} parent=27 // pred_check_branch
          %326 = sbr.rel (%p324) target = $region40
        $region39: #{tpu_custom_call.1} parent=27 // pred_region
          %327 = vst [vmem:[#allocation2] sm:$0xff] 0.0
          %328 = vst [vmem:[#allocation3] sm:$0xff] 0.0
          %329 = vst [vmem:[#allocation4] sm:$0xff] 0.0
        $region40: #{tpu_custom_call.1} parent=27 // pred_fallthru
          _
        %v330 = vld [vmem:[%s268] sm:$0xff]
        %v331 = vxor.u32 %v330, 2147483648
        %v332 = vmul.f32 %v331, 1.442695
        %v333 = vpow.pop %v332
        %v334 = vadd.f32 %v333, 1.0
        %v335 = vrcp.pop %v334
        %v336 = vmul.f32 1.0, %v335
        %v337 = vld [vmem:[%s277] sm:$0xff]
        %v338 = vld [vmem:[#allocation2] sm:$0xff]
        %v339 = vmul.f32 %v336, %v337
        %v340 = vadd.f32 %v339, 0.0
        %v341 = vadd.f32 %v338, %v340
        %342 = vst [vmem:[#allocation2] sm:$0xff] %v341
        %v343 = vld [vmem:[#allocation3] sm:$0xff]
        %v344 = vmul.f32 %v336, %v336
        %v345 = vadd.f32 %v344, 0.0
        %v346 = vadd.f32 %v343, %v345
        %347 = vst [vmem:[#allocation3] sm:$0xff] %v346
        %v348 = vld [vmem:[#allocation4] sm:$0xff]
        %v349 = vmul.f32 %v337, %v337
        %v350 = vadd.f32 %v349, 0.0
        %v351 = vadd.f32 %v348, %v350
        %352 = vst [vmem:[#allocation4] sm:$0xff] %v351
        // Predicated region
        $region41: #{tpu_custom_call.1} parent=27 // pred_check
          %p353 = pneg %p323
        $region42: #{tpu_custom_call.1} parent=27 // pred_check_branch
          %355 = sbr.rel (%p353) target = $region44
        $region43: #{tpu_custom_call.1} parent=27 // pred_region
          %v356 = vld [vmem:[#allocation2] sm:$0xff]
          %357 = vadd.xlane.f32.xlu0 %v356
          %v358 = vpop.xlane.xlu0 %357
          %v359 = vrot.slane %v358, 4
          %v360 = vadd.f32 %v358, %v359
          %v361 = vrot.slane %v360, 2
          %v362 = vadd.f32 %v360, %v361
          %v363 = vrot.slane %v362, 1
          %v364 = vadd.f32 %v362, %v363
          %s365 = vtos %v364
          %v366 = vstv %s365
          %367 = vst [vmem:[%s302] sm:$0xff] %v366
          %v368 = vld [vmem:[#allocation3] sm:$0xff]
          %369 = vadd.xlane.f32.xlu0 %v368
          %v370 = vpop.xlane.xlu0 %369
          %v371 = vrot.slane %v370, 4
          %v372 = vadd.f32 %v370, %v371
          %v373 = vrot.slane %v372, 2
          %v374 = vadd.f32 %v372, %v373
          %v375 = vrot.slane %v374, 1
          %v376 = vadd.f32 %v374, %v375
          %s377 = vtos %v376
          %v378 = vstv %s377
          %379 = vst [vmem:[%s309] sm:$0xff] %v378
          %v380 = vld [vmem:[#allocation4] sm:$0xff]
          %381 = vadd.xlane.f32.xlu0 %v380
          %v382 = vpop.xlane.xlu0 %381
          %v383 = vrot.slane %v382, 4
          %v384 = vadd.f32 %v382, %v383
          %v385 = vrot.slane %v384, 2
          %v386 = vadd.f32 %v384, %v385
          %v387 = vrot.slane %v386, 1
          %v388 = vadd.f32 %v386, %v387
          %s389 = vtos %v388
          %v390 = vstv %s389
          %391 = vst [vmem:[%s316] sm:$0xff] %v390
        $region44: #{tpu_custom_call.1} parent=27 // pred_fallthru
          _
        %s392 = sand.u32 %s125, 1
        %s393 = scalar_lea.sflag [#allocation7], %s392
        %s394 = sand.u32 %s125, 1
        %s395 = smul.addr %s394, 8
        %s396 = scalar_lea.vmem [#allocation10], %s395
        %s397 = sand.u32 %s28, 1
        %s398 = scalar_lea.sflag [#allocation12], %s397
        %s399 = sand.u32 %s153, 1
        %s400 = smul.addr %s399, 8
        %s401 = scalar_lea.vmem [#allocation11], %s400
        %s402 = sand.u32 %s28, 1
        %s403 = scalar_lea.sflag [#allocation12], %s402
        %s404 = sand.u32 %s181, 1
        %s405 = smul.addr %s404, 8
        %s406 = scalar_lea.vmem [#allocation13], %s405
        // Predicated region
        $region45: #{tpu_custom_call.1} parent=27 // pred_check
          %p407 = pneg %p135
        $region46: #{tpu_custom_call.1} parent=27 // pred_check_branch
          %409 = sbr.rel (%p407) target = $region48
        $region47: #{tpu_custom_call.1} parent=27 // pred_region
          %s411 = ssub.s32 128, 128
          %412 = vsyncadd %s393, %s411
          %s413 = sadd.s32 %s34, %s33
          %s414 = smul.addr %s413, 128
          %s415 = scalar_lea.hbm %s2, %s414
          %s417 = sshll.u32 %s396, 4
          %s418 = int_to_ptr.vmem [resolvable:$true] %s417
          %420 = dma.vmem_to_hbm [thread:$0]  %s418, 128, %s415, %s393
        $region48: #{tpu_custom_call.1} parent=27 // pred_fallthru
          _
        // Predicated region
        $region49: #{tpu_custom_call.1} parent=27 // pred_check
          %p421 = pneg %p163
        $region50: #{tpu_custom_call.1} parent=27 // pred_check_branch
          %423 = sbr.rel (%p421) target = $region52
        $region51: #{tpu_custom_call.1} parent=27 // pred_region
          %s425 = ssub.s32 128, 128
          %426 = vsyncadd %s398, %s425
          %s427 = sadd.s32 %s34, %s33
          %s428 = smul.addr %s427, 128
          %s429 = scalar_lea.hbm %s3, %s428
          %s431 = sshll.u32 %s401, 4
          %s432 = int_to_ptr.vmem [resolvable:$true] %s431
          %434 = dma.vmem_to_hbm [thread:$0]  %s432, 128, %s429, %s398
        $region52: #{tpu_custom_call.1} parent=27 // pred_fallthru
          _
        // Predicated region
        $region53: #{tpu_custom_call.1} parent=27 // pred_check
          %p435 = pneg %p191
        $region54: #{tpu_custom_call.1} parent=27 // pred_check_branch
          %437 = sbr.rel (%p435) target = $region56
        $region55: #{tpu_custom_call.1} parent=27 // pred_region
          %s439 = ssub.s32 128, 128
          %440 = vsyncadd %s403, %s439
          %s441 = sadd.s32 %s34, %s33
          %s442 = smul.addr %s441, 128
          %s443 = scalar_lea.hbm %s4, %s442
          %s445 = sshll.u32 %s406, 4
          %s446 = int_to_ptr.vmem [resolvable:$true] %s445
          %448 = dma.vmem_to_hbm [thread:$0]  %s446, 128, %s443, %s403
        $region56: #{tpu_custom_call.1} parent=27 // pred_fallthru
          _
      $region28: #{tpu_custom_call.1} parent=5 // pred_fallthru
        _
      %p449 = scmp.le.s32.totalorder 2, %s23
      // Predicated region
      $region57: #{tpu_custom_call.1} parent=5 // pred_check
        %p450 = pneg %p449
      $region58: #{tpu_custom_call.1} parent=5 // pred_check_branch
        %452 = sbr.rel (%p450) target = $region60
      $region59: #{tpu_custom_call.1} parent=5 // pred_region
        %s453 = ssub.s32 %s23, 2
        // Predicated region
        $region61: #{tpu_custom_call.1} parent=59 // pred_check
          %p454 = pneg %p141
        $region62: #{tpu_custom_call.1} parent=59 // pred_check_branch
          %456 = sbr.rel (%p454) target = $region64
        $region63: #{tpu_custom_call.1} parent=59 // pred_region
          %s457 = sand.u32 %s126, 1
          %s458 = scalar_lea.sflag [#allocation7], %s457
          %s459 = sand.u32 %s126, 1
          %s460 = smul.addr %s459, 8
          %s461 = scalar_lea.vmem [#allocation10], %s460
          %462 = dma.done %s458, 128
        $region64: #{tpu_custom_call.1} parent=59 // pred_fallthru
          _
        // Predicated region
        $region65: #{tpu_custom_call.1} parent=59 // pred_check
          %p463 = pneg %p169
        $region66: #{tpu_custom_call.1} parent=59 // pred_check_branch
          %465 = sbr.rel (%p463) target = $region68
        $region67: #{tpu_custom_call.1} parent=59 // pred_region
          %s466 = sand.u32 %s29, 1
          %s467 = scalar_lea.sflag [#allocation12], %s466
          %s468 = sand.u32 %s154, 1
          %s469 = smul.addr %s468, 8
          %s470 = scalar_lea.vmem [#allocation11], %s469
          %471 = dma.done %s467, 128
        $region68: #{tpu_custom_call.1} parent=59 // pred_fallthru
          _
        // Predicated region
        $region69: #{tpu_custom_call.1} parent=59 // pred_check
          %p472 = pneg %p197
        $region70: #{tpu_custom_call.1} parent=59 // pred_check_branch
          %474 = sbr.rel (%p472) target = $region72
        $region71: #{tpu_custom_call.1} parent=59 // pred_region
          %s475 = sand.u32 %s29, 1
          %s476 = scalar_lea.sflag [#allocation12], %s475
          %s477 = sand.u32 %s182, 1
          %s478 = smul.addr %s477, 8
          %s479 = scalar_lea.vmem [#allocation13], %s478
          %480 = dma.done %s476, 128
        $region72: #{tpu_custom_call.1} parent=59 // pred_fallthru
          _
      $region60: #{tpu_custom_call.1} parent=5 // pred_fallthru
        _
    $region6: #{tpu_custom_call.1} parent=1 // loop_footer
      %s27 = sadd.s32 1, %s23
    $region7: #{tpu_custom_call.1} parent=1 // loop_footer_branch
      %22 = sbr.rel target = $region3
    $region8: #{tpu_custom_call.1} parent=1 // loop_exit
      _
    %481 = vsyncpa [#allocation6], 1
    %s482 = scalar_lea.sflag [#allocation6], 1
    %483 = vsyncpa %s482, 1
    %484 = vsyncpa [#allocation9], 1
    %s485 = scalar_lea.sflag [#allocation9], 1
    %486 = vsyncpa %s485, 1
    %487 = vsyncpa [#allocation7], 1
    %s488 = scalar_lea.sflag [#allocation7], 1
    %489 = vsyncpa %s488, 1
    %490 = vsyncpa [#allocation12], 1
    %s491 = scalar_lea.sflag [#allocation12], 1
    %492 = vsyncpa %s491, 1

</llo_original>
